<compile_context>
chip_gen: v6e
topology: v6e:2x2x1
jax: 0.10.0
libtpu: 0.0.40
codegen_flags: <defaults>
</compile_context>

<pallas_src>
from collections import OrderedDict
import functools

import jax
import jax.numpy as jnp
from jax.experimental import pallas as pl
from jax.experimental.pallas import tpu as pltpu


# --------------------------------------------------------------------------
# Kernel bodies (three tiers, fastest first).
# --------------------------------------------------------------------------
_MODE_ORDER = ("strided_hw", "strided_h", "concat")
_MODE_CACHE = {}  # dtype -> mode that compiles + is bit-exact on this toolchain


def _make_pool_kernel(mode, h, w, ho, wo):
    """o[b, i, j] = x[b, 2*i, 2*j]   (pure selection, inf/NaN exact)."""
    if mode == "strided_hw":
        # Review item 1: one strided read, no relayout/copy ops at all.
        def kernel(x_ref, o_ref):
            o_ref[...] = x_ref[:, pl.ds(0, ho, stride=2), pl.ds(0, wo, stride=2)]
    elif mode == "strided_h":
        # Sublane (row) subsample via a single strided load; only the lane (W)
        # axis still needs unit slices (Mosaic has no lane-strided load here).
        def kernel(x_ref, o_ref):
            xh = x_ref[:, pl.ds(0, ho, stride=2), :]           # (B, Ho, W)
            o_ref[...] = jnp.concatenate(
                [xh[:, :, j:j + 1] for j in range(0, w, 2)], axis=2)
    else:  # "concat" — known-good baseline body.
        def kernel(x_ref, o_ref):
            x = x_ref[...]
            xh = jnp.concatenate([x[:, i:i + 1, :] for i in range(0, h, 2)], axis=1)
            o_ref[...] = jnp.concatenate(
                [xh[:, :, j:j + 1] for j in range(0, w, 2)], axis=2)
    return kernel


def _pool_pallas_call(x_flat, b, ho, wo, mode, vmem_limit):
    nc, h, w = x_flat.shape
    return pl.pallas_call(
        _make_pool_kernel(mode, h, w, ho, wo),
        out_shape=jax.ShapeDtypeStruct((nc, ho, wo), x_flat.dtype),
        grid_spec=pltpu.PrefetchScalarGridSpec(
            num_scalar_prefetch=0,
            grid=(pl.cdiv(nc, b),),
            in_specs=[pl.BlockSpec((b, h, w), lambda i: (i, 0, 0))],
            out_specs=pl.BlockSpec((b, ho, wo), lambda i: (i, 0, 0)),
        ),
        compiler_params=pltpu.CompilerParams(
            dimension_semantics=("parallel",),
            vmem_limit_bytes=int(vmem_limit),
        ),
    )(x_flat)


# --------------------------------------------------------------------------
# Hardware-aware sizing.
# --------------------------------------------------------------------------
@functools.lru_cache(maxsize=1)
def _hw_params():
    """(per_block_budget_bytes, tensorcores_per_chip, vmem_capacity_or_None)."""
    budget = 12 << 20          # v6e / v7x / unknown: ~12 MiB per block (in+out)
    cores = 1
    vmem_cap = None
    try:
        info = pltpu.get_tpu_info()
        vmem_cap = getattr(info, "vmem_capacity_bytes", None)
        ver = ""
        for attr in ("chip_version", "chip", "version", "name"):
            v = getattr(info, attr, None)
            if v is not None:
                ver = str(v).lower()
                break
        if "5" in ver:
            cores = 1
            budget = 6 << 20   # v5e: keep the double-buffered working set small
        if "7" in ver:
            cores = 2          # v7x: 2 TensorCores share the 1-D parallel grid
        for attr in ("num_cores", "num_tensorcores", "tensorcores_per_chip",
                     "cores_per_chip"):
            v = getattr(info, attr, None)
            if isinstance(v, int) and v > 0:
                cores = v
                break
    except Exception:          # pragma: no cover - conservative fallback off-TPU
        pass
    return budget, cores, vmem_cap


def _choose_block_slabs(nc, h, w, ho, wo, itemsize):
    """Batch as many (n, c) slabs per grid step as the VMEM budget allows,
    with near-equal blocks and a >=num_cores step count only on multi-TC chips."""
    budget, cores, _ = _hw_params()
    per_slab = (h * w + ho * wo) * itemsize
    b_max = int(max(1, min(nc, budget // max(per_slab, 1))))
    min_steps = cores if nc >= cores else 1
    steps = max(pl.cdiv(nc, b_max), min_steps)
    return int(pl.cdiv(nc, steps))          # balanced: last block minimally padded


def _vmem_limit_bytes(block_in_bytes, block_out_bytes):
    """Explicit scoped-VMEM limit sized to the double-buffered working set."""
    _, _, vmem_cap = _hw_params()
    need = 2 * (block_in_bytes + block_out_bytes)      # Pallas double-buffers
    limit = int(need * 1.25) + (1 << 20)
    hard_cap = int(vmem_cap * 3 // 4) if vmem_cap else (48 << 20)
    return max(min(limit, hard_cap), 8 << 20)


# --------------------------------------------------------------------------
# Capability probe: pick the fastest kernel body this toolchain supports.
# --------------------------------------------------------------------------
def _probe_mode(dtype):
    # Tiny, awkwardly shaped (odd H/W) concrete probe; checks both that the
    # candidate lowers on this jaxlib AND that it is bit-exact.
    probe = jnp.arange(2 * 7 * 9, dtype=jnp.float32).astype(dtype).reshape(2, 7, 9)
    want = probe[:, ::2, ::2]
    for mode in _MODE_ORDER:
        try:
            got = _pool_pallas_call(probe, 2, 4, 5, mode, 8 << 20)
            jax.block_until_ready(got)
            if bool(jnp.array_equal(got, want)):
                return mode
        except Exception:
            continue
    return "concat"


# --------------------------------------------------------------------------
# Public op.
# --------------------------------------------------------------------------
def max_pool2d_k1_s2(x, *, block_slabs=None):
    """Equivalent of F.max_pool2d(x, kernel_size=1, stride=2, padding=0) (NCHW)."""
    n, c, h, w = x.shape
    ho = (h - 1) // 2 + 1
    wo = (w - 1) // 2 + 1
    nc = n * c
    x_flat = x.reshape(nc, h, w)
    itemsize = jnp.dtype(x.dtype).itemsize

    if block_slabs is None:
        b = _choose_block_slabs(nc, h, w, ho, wo, itemsize)
    else:
        b = int(min(max(int(block_slabs), 1), nc))       # test hook (ragged blocks)

    vmem_limit = _vmem_limit_bytes(b * h * w * itemsize, b * ho * wo * itemsize)

    dtype_key = jnp.dtype(x.dtype)
    mode = _MODE_CACHE.get(dtype_key)
    if mode is None:
        mode = _probe_mode(dtype_key)
        _MODE_CACHE[dtype_key] = mode

    try:
        out = _pool_pallas_call(x_flat, b, ho, wo, mode, vmem_limit)
    except Exception:
        if mode == "concat":
            raise
        mode = "concat"                                  # last-resort known-good body
        _MODE_CACHE[dtype_key] = mode
        out = _pool_pallas_call(x_flat, b, ho, wo, mode, vmem_limit)

    return out.reshape(n, c, ho, wo)


def extra_block_wrap_forward(names, x_list, results_list):
    """ExtraBlockWrap.forward with the Faster R-CNN default LastLevelMaxPool.

    names        : list[str]           (e.g. ["0", "1", "2", "3"])
    x_list       : list of NCHW arrays (backbone features; unused by LastLevelMaxPool)
    results_list : list of NCHW arrays (FPN outputs)
    returns      : OrderedDict {name: tensor} with an extra "pool" entry.
    """
    # TODO(synk): only LastLevelMaxPool is implemented; other ExtraFPNBlock
    # subclasses (e.g. LastLevelP6P7 with convs) would need their own kernels.
    pooled = max_pool2d_k1_s2(results_list[-1])
    new_results = list(results_list) + [pooled]
    new_names = list(names) + ["pool"]
    return OrderedDict(zip(new_names, new_results))


if __name__ == "__main__":
    key = jax.random.PRNGKey(0)
    names = ["0", "1", "2", "3"]
    N, C = 2, 4
    spatials = [32, 16, 8, 4]          # FPN pyramid levels

    keys = jax.random.split(key, 2 * len(spatials) + 1)
    results = [
        jax.random.normal(keys[i], (N, C, s, s), dtype=jnp.float32)
        for i, s in enumerate(spatials)
    ]
    x = [
        jax.random.normal(keys[len(spatials) + i], (N, C, s, s), dtype=jnp.float32)
        for i, s in enumerate(spatials)
    ]

    out = extra_block_wrap_forward(names, x, results)
    jax.block_until_ready(out["pool"])

    # Sanity checks against the semantics of the PyTorch module.
    assert list(out.keys()) == ["0", "1", "2", "3", "pool"]
    for k, r in zip(names, results):
        assert out[k] is r                                 # pass-through levels
    ref_pool = results[-1][:, :, ::2, ::2]                 # max_pool2d(k=1, s=2)
    assert out["pool"].shape == ref_pool.shape
    assert jnp.array_equal(out["pool"], ref_pool)

    # Odd spatial dims + non-finite values at discarded (odd-index) positions
    # must not leak into the output (exact selection, no 0*inf/0*NaN hazards).
    z = jax.random.normal(keys[-1], (2, 3, 7, 9), dtype=jnp.float32)
    z = z.at[:, :, 1, 3].set(jnp.inf).at[:, :, 3, 5].set(jnp.nan)
    p = max_pool2d_k1_s2(z)
    jax.block_until_ready(p)
    assert p.shape == (2, 3, 4, 5)
    assert jnp.array_equal(p, z[:, :, ::2, ::2])
    assert not bool(jnp.any(jnp.isnan(p)))

    # Ragged final block (NC=6 with block of 4 slabs -> last block is partial):
    # exercises Pallas boundary clipping flagged by the review.
    p2 = max_pool2d_k1_s2(z, block_slabs=4)
    jax.block_until_ready(p2)
    assert jnp.array_equal(p2, z[:, :, ::2, ::2])

    print("KERNEL_OK")
</pallas_src>

<mosaic_0001>
module attributes {stable_mosaic.version = 11 : i64} {
  func.func @kernel(%arg0: i32, %arg1: memref<2x7x9xf32, #tpu.memory_space<vmem>>, %arg2: memref<2x4x5xf32, #tpu.memory_space<vmem>>) attributes {dimension_semantics = [#tpu.dimension_semantics<parallel>], iteration_bounds = array<i64: 1>, scalar_prefetch = 0 : i64, scratch_operands = 0 : i64, tpu.core_type = #tpu.core_type<tc>, window_params = [{transform_indices = @transform_0, window_bounds = array<i64: 2, 7, 9>}, {transform_indices = @transform_1, window_bounds = array<i64: 2, 4, 5>}]} {
    %c0 = arith.constant 0 : index
    %c0_0 = arith.constant 0 : index
    %c0_1 = arith.constant 0 : index
    %0 = tpu.strided_load %arg1[%c0, %c0_0, %c0_1] {strides = array<i32: 1, 2, 2>} : memref<2x7x9xf32, #tpu.memory_space<vmem>>, vector<2x4x5xf32>
    %c0_2 = arith.constant 0 : index
    %c0_3 = arith.constant 0 : index
    %c0_4 = arith.constant 0 : index
    %1 = vector.load %arg2[%c0_2, %c0_3, %c0_4] : memref<2x4x5xf32, #tpu.memory_space<vmem>>, vector<2x4x5xf32>
    tpu.vector_store %arg2[%c0_2, %c0_3, %c0_4], %0 {strides = array<i32>} : memref<2x4x5xf32, #tpu.memory_space<vmem>>, vector<2x4x5xf32>,
    return
  }
  func.func @transform_0(%arg0: i32) -> (i32, i32, i32) {
    %c0_i32 = arith.constant 0 : i32
    %c0_i32_0 = arith.constant 0 : i32
    %c0_i32_1 = arith.constant 0 : i32
    return %arg0, %c0_i32, %c0_i32_0 : i32, i32, i32
  }
  func.func @transform_1(%arg0: i32) -> (i32, i32, i32) {
    %c0_i32 = arith.constant 0 : i32
    %c0_i32_0 = arith.constant 0 : i32
    %c0_i32_1 = arith.constant 0 : i32
    return %arg0, %c0_i32, %c0_i32_0 : i32, i32, i32
  }
}

module attributes {stable_mosaic.version = 11 : i64} {
  func.func @kernel(%arg0: i32, %arg1: memref<2x7x9xf32, #tpu.memory_space<vmem>>, %arg2: memref<2x4x5xf32, #tpu.memory_space<vmem>>) attributes {dimension_semantics = [#tpu.dimension_semantics<parallel>], iteration_bounds = array<i64: 1>, scalar_prefetch = 0 : i64, scratch_operands = 0 : i64, tpu.core_type = #tpu.core_type<tc>, window_params = [{transform_indices = @transform_0, window_bounds = array<i64: 2, 7, 9>}, {transform_indices = @transform_1, window_bounds = array<i64: 2, 4, 5>}]} {
    %c0 = arith.constant 0 : index
    %c0_0 = arith.constant 0 : index
    %c0_1 = arith.constant 0 : index
    %0 = tpu.strided_load %arg1[%c0, %c0_0, %c0_1] {strides = array<i32: 1, 2, 1>} : memref<2x7x9xf32, #tpu.memory_space<vmem>>, vector<2x4x9xf32>
    %1 = vector.extract_strided_slice %0 {offsets = [0, 0, 0], sizes = [2, 4, 1], strides = [1, 1, 1]} : vector<2x4x9xf32> to vector<2x4x1xf32>
    %2 = vector.extract_strided_slice %0 {offsets = [0, 0, 2], sizes = [2, 4, 1], strides = [1, 1, 1]} : vector<2x4x9xf32> to vector<2x4x1xf32>
    %3 = vector.extract_strided_slice %0 {offsets = [0, 0, 4], sizes = [2, 4, 1], strides = [1, 1, 1]} : vector<2x4x9xf32> to vector<2x4x1xf32>
    %4 = vector.extract_strided_slice %0 {offsets = [0, 0, 6], sizes = [2, 4, 1], strides = [1, 1, 1]} : vector<2x4x9xf32> to vector<2x4x1xf32>
    %5 = vector.extract_strided_slice %0 {offsets = [0, 0, 8], sizes = [2, 4, 1], strides = [1, 1, 1]} : vector<2x4x9xf32> to vector<2x4x1xf32>
    %6 = tpu.concatenate %1, %2, %3, %4, %5 in 2 : vector<2x4x1xf32>, vector<2x4x1xf32>, vector<2x4x1xf32>, vector<2x4x1xf32>, vector<2x4x1xf32> -> vector<2x4x5xf32>
    %c0_2 = arith.constant 0 : index
    %c0_3 = arith.constant 0 : index
    %c0_4 = arith.constant 0 : index
    %7 = vector.load %arg2[%c0_2, %c0_3, %c0_4] : memref<2x4x5xf32, #tpu.memory_space<vmem>>, vector<2x4x5xf32>
    tpu.vector_store %arg2[%c0_2, %c0_3, %c0_4], %6 {strides = array<i32>} : memref<2x4x5xf32, #tpu.memory_space<vmem>>, vector<2x4x5xf32>,
    return
  }
  func.func @transform_0(%arg0: i32) -> (i32, i32, i32) {
    %c0_i32 = arith.constant 0 : i32
    %c0_i32_0 = arith.constant 0 : i32
    %c0_i32_1 = arith.constant 0 : i32
    return %arg0, %c0_i32, %c0_i32_0 : i32, i32, i32
  }
  func.func @transform_1(%arg0: i32) -> (i32, i32, i32) {
    %c0_i32 = arith.constant 0 : i32
    %c0_i32_0 = arith.constant 0 : i32
    %c0_i32_1 = arith.constant 0 : i32
    return %arg0, %c0_i32, %c0_i32_0 : i32, i32, i32
  }
}

module attributes {stable_mosaic.version = 11 : i64} {
  func.func @kernel(%arg0: i32, %arg1: memref<2x7x9xf32, #tpu.memory_space<vmem>>, %arg2: memref<2x4x5xf32, #tpu.memory_space<vmem>>) attributes {dimension_semantics = [#tpu.dimension_semantics<parallel>], iteration_bounds = array<i64: 1>, scalar_prefetch = 0 : i64, scratch_operands = 0 : i64, tpu.core_type = #tpu.core_type<tc>, window_params = [{transform_indices = @transform_0, window_bounds = array<i64: 2, 7, 9>}, {transform_indices = @transform_1, window_bounds = array<i64: 2, 4, 5>}]} {
    %c0 = arith.constant 0 : index
    %c0_0 = arith.constant 0 : index
    %c0_1 = arith.constant 0 : index
    %0 = vector.load %arg1[%c0, %c0_0, %c0_1] : memref<2x7x9xf32, #tpu.memory_space<vmem>>, vector<2x7x9xf32>
    %1 = vector.extract_strided_slice %0 {offsets = [0, 0, 0], sizes = [2, 1, 9], strides = [1, 1, 1]} : vector<2x7x9xf32> to vector<2x1x9xf32>
    %2 = vector.extract_strided_slice %0 {offsets = [0, 2, 0], sizes = [2, 1, 9], strides = [1, 1, 1]} : vector<2x7x9xf32> to vector<2x1x9xf32>
    %3 = vector.extract_strided_slice %0 {offsets = [0, 4, 0], sizes = [2, 1, 9], strides = [1, 1, 1]} : vector<2x7x9xf32> to vector<2x1x9xf32>
    %4 = vector.extract_strided_slice %0 {offsets = [0, 6, 0], sizes = [2, 1, 9], strides = [1, 1, 1]} : vector<2x7x9xf32> to vector<2x1x9xf32>
    %5 = tpu.concatenate %1, %2, %3, %4 in 1 : vector<2x1x9xf32>, vector<2x1x9xf32>, vector<2x1x9xf32>, vector<2x1x9xf32> -> vector<2x4x9xf32>
    %6 = vector.extract_strided_slice %5 {offsets = [0, 0, 0], sizes = [2, 4, 1], strides = [1, 1, 1]} : vector<2x4x9xf32> to vector<2x4x1xf32>
    %7 = vector.extract_strided_slice %5 {offsets = [0, 0, 2], sizes = [2, 4, 1], strides = [1, 1, 1]} : vector<2x4x9xf32> to vector<2x4x1xf32>
    %8 = vector.extract_strided_slice %5 {offsets = [0, 0, 4], sizes = [2, 4, 1], strides = [1, 1, 1]} : vector<2x4x9xf32> to vector<2x4x1xf32>
    %9 = vector.extract_strided_slice %5 {offsets = [0, 0, 6], sizes = [2, 4, 1], strides = [1, 1, 1]} : vector<2x4x9xf32> to vector<2x4x1xf32>
    %10 = vector.extract_strided_slice %5 {offsets = [0, 0, 8], sizes = [2, 4, 1], strides = [1, 1, 1]} : vector<2x4x9xf32> to vector<2x4x1xf32>
    %11 = tpu.concatenate %6, %7, %8, %9, %10 in 2 : vector<2x4x1xf32>, vector<2x4x1xf32>, vector<2x4x1xf32>, vector<2x4x1xf32>, vector<2x4x1xf32> -> vector<2x4x5xf32>
    %c0_2 = arith.constant 0 : index
    %c0_3 = arith.constant 0 : index
    %c0_4 = arith.constant 0 : index
    %12 = vector.load %arg2[%c0_2, %c0_3, %c0_4] : memref<2x4x5xf32, #tpu.memory_space<vmem>>, vector<2x4x5xf32>
    tpu.vector_store %arg2[%c0_2, %c0_3, %c0_4], %11 {strides = array<i32>} : memref<2x4x5xf32, #tpu.memory_space<vmem>>, vector<2x4x5xf32>,
    return
  }
  func.func @transform_0(%arg0: i32) -> (i32, i32, i32) {
    %c0_i32 = arith.constant 0 : i32
    %c0_i32_0 = arith.constant 0 : i32
    %c0_i32_1 = arith.constant 0 : i32
    return %arg0, %c0_i32, %c0_i32_0 : i32, i32, i32
  }
  func.func @transform_1(%arg0: i32) -> (i32, i32, i32) {
    %c0_i32 = arith.constant 0 : i32
    %c0_i32_0 = arith.constant 0 : i32
    %c0_i32_1 = arith.constant 0 : i32
    return %arg0, %c0_i32, %c0_i32_0 : i32, i32, i32
  }
}

module attributes {stable_mosaic.version = 11 : i64} {
  func.func @kernel(%arg0: i32, %arg1: memref<8x4x4xf32, #tpu.memory_space<vmem>>, %arg2: memref<8x2x2xf32, #tpu.memory_space<vmem>>) attributes {dimension_semantics = [#tpu.dimension_semantics<parallel>], iteration_bounds = array<i64: 1>, scalar_prefetch = 0 : i64, scratch_operands = 0 : i64, tpu.core_type = #tpu.core_type<tc>, window_params = [{transform_indices = @transform_0, window_bounds = array<i64: 8, 4, 4>}, {transform_indices = @transform_1, window_bounds = array<i64: 8, 2, 2>}]} {
    %c0 = arith.constant 0 : index
    %c0_0 = arith.constant 0 : index
    %c0_1 = arith.constant 0 : index
    %0 = vector.load %arg1[%c0, %c0_0, %c0_1] : memref<8x4x4xf32, #tpu.memory_space<vmem>>, vector<8x4x4xf32>
    %1 = vector.extract_strided_slice %0 {offsets = [0, 0, 0], sizes = [8, 1, 4], strides = [1, 1, 1]} : vector<8x4x4xf32> to vector<8x1x4xf32>
    %2 = vector.extract_strided_slice %0 {offsets = [0, 2, 0], sizes = [8, 1, 4], strides = [1, 1, 1]} : vector<8x4x4xf32> to vector<8x1x4xf32>
    %3 = tpu.concatenate %1, %2 in 1 : vector<8x1x4xf32>, vector<8x1x4xf32> -> vector<8x2x4xf32>
    %4 = vector.extract_strided_slice %3 {offsets = [0, 0, 0], sizes = [8, 2, 1], strides = [1, 1, 1]} : vector<8x2x4xf32> to vector<8x2x1xf32>
    %5 = vector.extract_strided_slice %3 {offsets = [0, 0, 2], sizes = [8, 2, 1], strides = [1, 1, 1]} : vector<8x2x4xf32> to vector<8x2x1xf32>
    %6 = tpu.concatenate %4, %5 in 2 : vector<8x2x1xf32>, vector<8x2x1xf32> -> vector<8x2x2xf32>
    %c0_2 = arith.constant 0 : index
    %c0_3 = arith.constant 0 : index
    %c0_4 = arith.constant 0 : index
    %7 = vector.load %arg2[%c0_2, %c0_3, %c0_4] : memref<8x2x2xf32, #tpu.memory_space<vmem>>, vector<8x2x2xf32>
    tpu.vector_store %arg2[%c0_2, %c0_3, %c0_4], %6 {strides = array<i32>} : memref<8x2x2xf32, #tpu.memory_space<vmem>>, vector<8x2x2xf32>,
    return
  }
  func.func @transform_0(%arg0: i32) -> (i32, i32, i32) {
    %c0_i32 = arith.constant 0 : i32
    %c0_i32_0 = arith.constant 0 : i32
    %c0_i32_1 = arith.constant 0 : i32
    return %arg0, %c0_i32, %c0_i32_0 : i32, i32, i32
  }
  func.func @transform_1(%arg0: i32) -> (i32, i32, i32) {
    %c0_i32 = arith.constant 0 : i32
    %c0_i32_0 = arith.constant 0 : i32
    %c0_i32_1 = arith.constant 0 : i32
    return %arg0, %c0_i32, %c0_i32_0 : i32, i32, i32
  }
}

</mosaic_0001>

<llo_original>
// kernel: tpu_custom_call.1
$region0: #{tpu_custom_call.1}
  #allocation0 [shape = 'u32[]', space=smem, size = 0x4, offset = 0x4, fixed_abs, tag = 'smem constant byte address 0x4 - core index']
  #allocation1 [shape = 'u32[144,128]{1,0:T(1,128)}', space=vmem, size = 0x12000, scoped, tag = 'internal scratch']
  %s0 = inlined_call_operand.vmem [shape: f32[2,7,9], index: 0, kind: input, shape index: {}]
  %s1 = inlined_call_operand.hbm [shape: f32[2,4,5], index: 1, kind: output, shape index: {}]
  %s2 = sld [smem:[#allocation0]]
  $region14: #{tpu_custom_call.1} parent=0
    _
  %s4 = ssub.s32 1, %s2
  %s5 = scalar_select 0, %s4, %s2
  $region1: #{tpu_custom_call.1} parent=0
    #allocation2 [shape = 'u8[4096]{0}', space=vmem, size = 0x1000, scoped, tag = 'output window, operand 0, single buffered']
    #allocation3 [shape = 's32[1]{0}', space=sflag, size = 0x4, scoped, tag = 'scoped memory for tpu_custom_call.1']
    %6 = vsyncpa [#allocation3], 0
    // Predicated region
    $region2: #{tpu_custom_call.1} parent=1 // pred_check
      _
    $region3: #{tpu_custom_call.1} parent=1 // pred_check_branch
      %8 = sbr.rel (0) target = $region5
    $region4: #{tpu_custom_call.1} parent=1 // pred_region
      _
    $region5: #{tpu_custom_call.1} parent=1 // pred_fallthru
      _
    %v9 = vld [vmem:[%s0] ss:$2 sm:$0xf]
    %s10 = scalar_lea.vmem %s0, 8
    %v11 = vld [vmem:[%s10] ss:$2 sm:$0xf]
    %14 = vrot.lane.b32.xlu0 %v9, 127
    %v15 = vpop.permute.xlu0 %14
    %16 = vrot.lane.b32.xlu0 %v11, 127
    %v17 = vpop.permute.xlu0 %16
    %20 = vrot.lane.b32.xlu0 %v9, 126
    %v21 = vpop.permute.xlu0 %20
    %22 = vrot.lane.b32.xlu0 %v11, 126
    %v23 = vpop.permute.xlu0 %22
    %26 = vrot.lane.b32.xlu0 %v9, 125
    %v27 = vpop.permute.xlu0 %26
    %28 = vrot.lane.b32.xlu0 %v11, 125
    %v29 = vpop.permute.xlu0 %28
    %32 = vrot.lane.b32.xlu0 %v9, 124
    %v33 = vpop.permute.xlu0 %32
    %34 = vrot.lane.b32.xlu0 %v11, 124
    %v35 = vpop.permute.xlu0 %34
    %vm38 = vcmask 7168
    %v39 = vsel %vm38, %v9, %v15
    %v40 = vsel %vm38, %v11, %v17
    %vm41 = vcmask 15360
    %v42 = vsel %vm41, %v39, %v21
    %v43 = vsel %vm41, %v40, %v23
    %vm44 = vcmask 23552
    %v45 = vsel %vm44, %v42, %v27
    %v46 = vsel %vm44, %v43, %v29
    %vm47 = vcmask 31744
    %v48 = vsel %vm47, %v45, %v33
    %v49 = vsel %vm47, %v46, %v35
    %vm50 = vcmask 35840
    %51 = vst.msk [vmem:[#allocation2] sm:$0xf] %vm50, %v48
    %52 = vst.msk [vmem:[#allocation2 + $0x4] sm:$0xf] %vm50, %v49
    // Predicated region
    $region6: #{tpu_custom_call.1} parent=1 // pred_check
      _
    $region7: #{tpu_custom_call.1} parent=1 // pred_check_branch
      %54 = sbr.rel (0) target = $region9
    $region8: #{tpu_custom_call.1} parent=1 // pred_region
      %s56 = ssub.s32 128, 128
      %57 = vsyncadd [#allocation3], %s56
      %s58 = sshll.u32 [#allocation2], 4
      %s59 = int_to_ptr.vmem [resolvable:$true] %s58
      %64 = dma.vmem_to_hbm [thread:$0]  %s59, 128, %s1, [#allocation3], 64, 64, 4
    $region9: #{tpu_custom_call.1} parent=1 // pred_fallthru
      _
    // Predicated region
    $region10: #{tpu_custom_call.1} parent=1 // pred_check
      _
    $region11: #{tpu_custom_call.1} parent=1 // pred_check_branch
      %66 = sbr.rel (0) target = $region13
    $region12: #{tpu_custom_call.1} parent=1 // pred_region
      %67 = dma.done [#allocation3], 128
    $region13: #{tpu_custom_call.1} parent=1 // pred_fallthru
      _
    %68 = vsyncpa [#allocation3], 1

// kernel: tpu_custom_call.1
$region0: #{tpu_custom_call.1}
  #allocation0 [shape = 'u32[]', space=smem, size = 0x4, offset = 0x4, fixed_abs, tag = 'smem constant byte address 0x4 - core index']
  #allocation1 [shape = 'u32[144,128]{1,0:T(1,128)}', space=vmem, size = 0x12000, scoped, tag = 'internal scratch']
  %s0 = inlined_call_operand.vmem [shape: f32[2,7,9], index: 0, kind: input, shape index: {}]
  %s1 = inlined_call_operand.hbm [shape: f32[2,4,5], index: 1, kind: output, shape index: {}]
  %s2 = sld [smem:[#allocation0]]
  $region14: #{tpu_custom_call.1} parent=0
    _
  %s4 = ssub.s32 1, %s2
  %s5 = scalar_select 0, %s4, %s2
  $region1: #{tpu_custom_call.1} parent=0
    #allocation2 [shape = 'u8[4096]{0}', space=vmem, size = 0x1000, scoped, tag = 'output window, operand 0, single buffered']
    #allocation3 [shape = 's32[1]{0}', space=sflag, size = 0x4, scoped, tag = 'scoped memory for tpu_custom_call.1']
    %6 = vsyncpa [#allocation3], 0
    // Predicated region
    $region2: #{tpu_custom_call.1} parent=1 // pred_check
      _
    $region3: #{tpu_custom_call.1} parent=1 // pred_check_branch
      %8 = sbr.rel (0) target = $region5
    $region4: #{tpu_custom_call.1} parent=1 // pred_region
      _
    $region5: #{tpu_custom_call.1} parent=1 // pred_fallthru
      _
    %v9 = vld [vmem:[%s0] sm:$0x7f]
    %v10 = vld [vmem:[%s0 + $0x8] sm:$0x7f]
    %v13 = vrot.slane %v9, 1
    %v14 = vrot.slane %v10, 1
    %v17 = vrot.slane %v9, 2
    %v18 = vrot.slane %v10, 2
    %v21 = vrot.slane %v9, 3
    %v22 = vrot.slane %v10, 3
    %vm25 = vcmask 1040384
    %v26 = vsel %vm25, %v9, %v13
    %v27 = vsel %vm25, %v10, %v14
    %vm28 = vcmask 1041408
    %v29 = vsel %vm28, %v26, %v17
    %v30 = vsel %vm28, %v27, %v18
    %vm31 = vcmask 1042432
    %v32 = vsel %vm31, %v29, %v21
    %v33 = vsel %vm31, %v30, %v22
    %36 = vrot.lane.b32.xlu0 %v32, 127
    %v37 = vpop.permute.xlu0 %36
    %38 = vrot.lane.b32.xlu0 %v33, 127
    %v39 = vpop.permute.xlu0 %38
    %42 = vrot.lane.b32.xlu0 %v32, 126
    %v43 = vpop.permute.xlu0 %42
    %44 = vrot.lane.b32.xlu0 %v33, 126
    %v45 = vpop.permute.xlu0 %44
    %48 = vrot.lane.b32.xlu0 %v32, 125
    %v49 = vpop.permute.xlu0 %48
    %50 = vrot.lane.b32.xlu0 %v33, 125
    %v51 = vpop.permute.xlu0 %50
    %54 = vrot.lane.b32.xlu0 %v32, 124
    %v55 = vpop.permute.xlu0 %54
    %56 = vrot.lane.b32.xlu0 %v33, 124
    %v57 = vpop.permute.xlu0 %56
    %vm60 = vcmask 7168
    %v61 = vsel %vm60, %v32, %v37
    %v62 = vsel %vm60, %v33, %v39
    %vm63 = vcmask 15360
    %v64 = vsel %vm63, %v61, %v43
    %v65 = vsel %vm63, %v62, %v45
    %vm66 = vcmask 23552
    %v67 = vsel %vm66, %v64, %v49
    %v68 = vsel %vm66, %v65, %v51
    %vm69 = vcmask 31744
    %v70 = vsel %vm69, %v67, %v55
    %v71 = vsel %vm69, %v68, %v57
    %vm72 = vcmask 35840
    %73 = vst.msk [vmem:[#allocation2] sm:$0xf] %vm72, %v70
    %74 = vst.msk [vmem:[#allocation2 + $0x4] sm:$0xf] %vm72, %v71
    // Predicated region
    $region6: #{tpu_custom_call.1} parent=1 // pred_check
      _
    $region7: #{tpu_custom_call.1} parent=1 // pred_check_branch
      %76 = sbr.rel (0) target = $region9
    $region8: #{tpu_custom_call.1} parent=1 // pred_region
      %s78 = ssub.s32 128, 128
      %79 = vsyncadd [#allocation3], %s78
      %s80 = sshll.u32 [#allocation2], 4
      %s81 = int_to_ptr.vmem [resolvable:$true] %s80
      %86 = dma.vmem_to_hbm [thread:$0]  %s81, 128, %s1, [#allocation3], 64, 64, 4
    $region9: #{tpu_custom_call.1} parent=1 // pred_fallthru
      _
    // Predicated region
    $region10: #{tpu_custom_call.1} parent=1 // pred_check
      _
    $region11: #{tpu_custom_call.1} parent=1 // pred_check_branch
      %88 = sbr.rel (0) target = $region13
    $region12: #{tpu_custom_call.1} parent=1 // pred_region
      %89 = dma.done [#allocation3], 128
    $region13: #{tpu_custom_call.1} parent=1 // pred_fallthru
      _
    %90 = vsyncpa [#allocation3], 1

// kernel: tpu_custom_call.1
$region0: #{tpu_custom_call.1}
  #allocation0 [shape = 'u32[]', space=smem, size = 0x4, offset = 0x4, fixed_abs, tag = 'smem constant byte address 0x4 - core index']
  #allocation1 [shape = 'u32[144,128]{1,0:T(1,128)}', space=vmem, size = 0x12000, scoped, tag = 'internal scratch']
  %s0 = inlined_call_operand.vmem [shape: f32[8,4,4], index: 0, kind: input, shape index: {}]
  %s1 = inlined_call_operand.vmem [shape: f32[8,2,2], index: 1, kind: output, shape index: {}]
  %s2 = sld [smem:[#allocation0]]
  $region14: #{tpu_custom_call.1} parent=0
    _
  %s4 = ssub.s32 1, %s2
  %s5 = scalar_select 0, %s4, %s2
  // Predicated region
  $region2: #{tpu_custom_call.1} parent=0 // pred_check
    _
  $region3: #{tpu_custom_call.1} parent=0 // pred_check_branch
    %7 = sbr.rel (0) target = $region5
  $region4: #{tpu_custom_call.1} parent=0 // pred_region
    _
  $region5: #{tpu_custom_call.1} parent=0 // pred_fallthru
    _
  %v8 = vld [vmem:[%s0] sm:$0xf]
  %v9 = vld [vmem:[%s0 + $0x4] sm:$0xf]
  %v10 = vld [vmem:[%s0 + $0x8] sm:$0xf]
  %v11 = vld [vmem:[%s0 + $0xc] sm:$0xf]
  %v12 = vld [vmem:[%s0 + $0x10] sm:$0xf]
  %v13 = vld [vmem:[%s0 + $0x14] sm:$0xf]
  %v14 = vld [vmem:[%s0 + $0x18] sm:$0xf]
  %v15 = vld [vmem:[%s0 + $0x1c] sm:$0xf]
  %v24 = vrot.slane %v8, 1
  %v25 = vrot.slane %v9, 1
  %v26 = vrot.slane %v10, 1
  %v27 = vrot.slane %v11, 1
  %v28 = vrot.slane %v12, 1
  %v29 = vrot.slane %v13, 1
  %v30 = vrot.slane %v14, 1
  %v31 = vrot.slane %v15, 1
  %vm40 = vcmask 1040384
  %v41 = vsel %vm40, %v8, %v24
  %v42 = vsel %vm40, %v9, %v25
  %v43 = vsel %vm40, %v10, %v26
  %v44 = vsel %vm40, %v11, %v27
  %v45 = vsel %vm40, %v12, %v28
  %v46 = vsel %vm40, %v13, %v29
  %v47 = vsel %vm40, %v14, %v30
  %v48 = vsel %vm40, %v15, %v31
  %57 = vrot.lane.b32.xlu0 %v41, 127
  %v58 = vpop.permute.xlu0 %57
  %59 = vrot.lane.b32.xlu0 %v42, 127
  %v60 = vpop.permute.xlu0 %59
  %61 = vrot.lane.b32.xlu0 %v43, 127
  %v62 = vpop.permute.xlu0 %61
  %63 = vrot.lane.b32.xlu0 %v44, 127
  %v64 = vpop.permute.xlu0 %63
  %65 = vrot.lane.b32.xlu0 %v45, 127
  %v66 = vpop.permute.xlu0 %65
  %67 = vrot.lane.b32.xlu0 %v46, 127
  %v68 = vpop.permute.xlu0 %67
  %69 = vrot.lane.b32.xlu0 %v47, 127
  %v70 = vpop.permute.xlu0 %69
  %71 = vrot.lane.b32.xlu0 %v48, 127
  %v72 = vpop.permute.xlu0 %71
  %vm81 = vcmask 7168
  %v82 = vsel %vm81, %v41, %v58
  %v83 = vsel %vm81, %v42, %v60
  %v84 = vsel %vm81, %v43, %v62
  %v85 = vsel %vm81, %v44, %v64
  %v86 = vsel %vm81, %v45, %v66
  %v87 = vsel %vm81, %v46, %v68
  %v88 = vsel %vm81, %v47, %v70
  %v89 = vsel %vm81, %v48, %v72
  %vm90 = vcmask 9216
  %91 = vst.msk [vmem:[%s1] sm:$0x3] %vm90, %v82
  %92 = vst.msk [vmem:[%s1 + $0x2] sm:$0x3] %vm90, %v83
  %93 = vst.msk [vmem:[%s1 + $0x4] sm:$0x3] %vm90, %v84
  %94 = vst.msk [vmem:[%s1 + $0x6] sm:$0x3] %vm90, %v85
  %95 = vst.msk [vmem:[%s1 + $0x8] sm:$0x3] %vm90, %v86
  %96 = vst.msk [vmem:[%s1 + $0xa] sm:$0x3] %vm90, %v87
  %97 = vst.msk [vmem:[%s1 + $0xc] sm:$0x3] %vm90, %v88
  %98 = vst.msk [vmem:[%s1 + $0xe] sm:$0x3] %vm90, %v89
  // Predicated region
  $region6: #{tpu_custom_call.1} parent=0 // pred_check
    _
  $region7: #{tpu_custom_call.1} parent=0 // pred_check_branch
    %100 = sbr.rel (0) target = $region9
  $region8: #{tpu_custom_call.1} parent=0 // pred_region
    _
  $region9: #{tpu_custom_call.1} parent=0 // pred_fallthru
    _
  // Predicated region
  $region10: #{tpu_custom_call.1} parent=0 // pred_check
    _
  $region11: #{tpu_custom_call.1} parent=0 // pred_check_branch
    %102 = sbr.rel (0) target = $region13
  $region12: #{tpu_custom_call.1} parent=0 // pred_region
    _
  $region13: #{tpu_custom_call.1} parent=0 // pred_fallthru
    _

</llo_original>
